<compile_context>
chip_gen: v7x
topology: tpu7x:2x2x1
jax: 0.10.0
libtpu: 0.0.40
codegen_flags: <defaults>
</compile_context>

<pallas_src>
import jax
import jax.numpy as jnp
import numpy as np
from jax.experimental import pallas as pl
from jax.experimental.pallas import tpu as pltpu


# ----------------------------------------------------------------------------
# One-off probe: pltpu.roll sublane-rotation sign convention
# ----------------------------------------------------------------------------
_ROLL_DOWN_SIGN = None


def _roll_down_sign():
    """Return s in {+1,-1} such that pltpu.roll(x, s, axis=-2)[h] == x[h-1]."""
    global _ROLL_DOWN_SIGN
    if _ROLL_DOWN_SIGN is None:
        def probe(x_ref, o_ref):
            o_ref[...] = pltpu.roll(x_ref[...], 1, axis=0)

        x = jax.lax.broadcasted_iota(jnp.float32, (8, 128), 0)
        y = pl.pallas_call(
            probe, out_shape=jax.ShapeDtypeStruct((8, 128), jnp.float32))(x)
        _ROLL_DOWN_SIGN = 1 if int(jax.device_get(y)[1, 0]) == 0 else -1
    return _ROLL_DOWN_SIGN


# ----------------------------------------------------------------------------
# Kernel
# ----------------------------------------------------------------------------
def _make_kernel(Bb, H, WC, roll_down_sign):
    G = 3 * WC
    N = Bb * H
    # Positive rotation amounts realizing "row h <- row h-1" / "row h <- row h+1"
    # on the flattened (Bb*H, 3*WC) slab.  Wrapped / cross-batch rows land on
    # the H-boundary rows that the host-precomputed tap maps zero out.
    amt_hm1 = (1 if roll_down_sign == 1 else N - 1) % N
    amt_hp1 = (N - 1 if roll_down_sign == 1 else 1) % N

    def kernel(x_ref, pw_ref, lin_ref, taps_ref, aux_ref, out_ref):
        x = x_ref[...]                                        # (Bb, H, WC) f32

        def dwconv(slab2d, b):
            # slab2d: (Bb*H, 3*WC) f32.  Lane group j already holds the feature
            # map W-shifted by (j-1) (folded into the MXU weights).  Only the H
            # shift remains: XLU sublane rolls, no halo scratch, no store/reload.
            hm1 = pltpu.roll(slab2d, amt_hm1, axis=0).reshape(Bb, H, G)
            hp1 = pltpu.roll(slab2d, amt_hp1, axis=0).reshape(Bb, H, G)
            mid = slab2d.reshape(Bb, H, G)
            p = (hm1 * taps_ref[b, 0] + mid * taps_ref[b, 1]
                 + hp1 * taps_ref[b, 2])                      # (Bb, H, 3*WC)
            out = p[:, :, 0:WC] + p[:, :, WC:2 * WC] + p[:, :, 2 * WC:3 * WC]
            return out + aux_ref[b, :WC]                      # depthwise bias

        # ---- head: BSConvU = 1x1 pointwise (no bias) + 3x3 depthwise (bias)
        x_bf = x.reshape(N, WC).astype(jnp.bfloat16)
        pw = jnp.dot(x_bf, pw_ref[...], preferred_element_type=jnp.float32)
        head = dwconv(pw, 0)
        y = head + x
        head_out = jnp.where(y > 0, y, 0.05 * y)              # LeakyReLU(0.05)
        ho_bf = head_out.reshape(N, WC).astype(jnp.bfloat16)

        def branch(p_idx):
            # One (WC, 3*WC) matmul per branch, consumed immediately, so only a
            # single (Bb*H, 3*WC) f32 slab is live at any point.
            lin = jnp.dot(ho_bf, lin_ref[p_idx],
                          preferred_element_type=jnp.float32)
            lin = lin + aux_ref[4 + p_idx]                    # one lane-dense bias add
            return dwconv(lin, p_idx + 1)

        attn = jax.nn.sigmoid(branch(0))                      # upper attention
        low = branch(1) + branch(2)                           # lower_0 + lower_1
        out_ref[...] = low * attn

    return kernel


# ----------------------------------------------------------------------------
# Host-side parameter packing (done once per model)
# ----------------------------------------------------------------------------
def pack_yqblock_params(params, H, W, C):
    WC = W * C
    rc = C // 2
    f32 = jnp.float32

    def band(dj):                      # (W, W): 1 where w_in = w_out + dj
        return jnp.eye(W, W, k=-dj, dtype=f32)

    def shifted_blocks(m):             # (C, C) [ci, co] -> (W*C, 3*W*C)
        return jnp.concatenate([jnp.kron(band(j - 1), m) for j in range(3)],
                               axis=1)

    # Channel split (upper = first rc, lower = last rc channels of head_out)
    # is encoded as zero rows of the folded linear weights.
    m_up = jnp.zeros((C, C), f32).at[:rc].set(params['up_lin_w'])
    m_lo = jnp.zeros((C, C), f32).at[rc:].set(params['lo_lin_w'])
    m_ll = jnp.zeros((C, C), f32).at[rc:].set(params['ll_lin_w'])

    pw_big = shifted_blocks(params['pw_w']).astype(jnp.bfloat16)      # (WC, 3WC)
    lin_big = jnp.stack([shifted_blocks(m_up), shifted_blocks(m_lo),
                         shifted_blocks(m_ll)]).astype(jnp.bfloat16)  # (3, WC, 3WC)

    def branch_taps(w9):               # (9, C) -> (3, H, 3*WC) boundary-masked maps
        rows = []
        for i in range(3):
            r = jnp.concatenate([jnp.tile(w9[3 * i + j], W) for j in range(3)])
            r = jnp.broadcast_to(r, (H, 3 * WC))
            if i == 0:                 # source row h-1: output row 0 is padding
                r = r.at[0, :].set(0.0)
            elif i == 2:               # source row h+1: output row H-1 is padding
                r = r.at[H - 1, :].set(0.0)
            rows.append(r)
        return jnp.stack(rows)

    taps = jnp.stack([branch_taps(params['head_dw_w']),
                      branch_taps(params['up_dw_w']),
                      branch_taps(params['lo_dw_w']),
                      branch_taps(params['ll_dw_w'])])                # (4, 3, H, 3WC)

    def tile_bias(b):                  # (C,) -> (WC,)
        return jnp.tile(b, W)

    def lin_bias3(b):                  # (C,) -> (3WC,), zero where W-shift invalid
        rows = []
        for j in range(3):
            dj = j - 1
            valid = ((jnp.arange(W) + dj) >= 0) & ((jnp.arange(W) + dj) < W)
            rows.append(tile_bias(b) * jnp.repeat(valid.astype(f32), C))
        return jnp.concatenate(rows)

    aux = jnp.zeros((7, 3 * WC), f32)
    aux = aux.at[0, :WC].set(tile_bias(params['head_dw_b']))
    aux = aux.at[1, :WC].set(tile_bias(params['up_dw_b']))
    aux = aux.at[2, :WC].set(tile_bias(params['lo_dw_b']))
    aux = aux.at[3, :WC].set(tile_bias(params['ll_dw_b']))
    aux = aux.at[4].set(lin_bias3(params['up_lin_b']))
    aux = aux.at[5].set(lin_bias3(params['lo_lin_b']))
    aux = aux.at[6].set(lin_bias3(params['ll_lin_b']))

    return {'pw': pw_big, 'lin': lin_big, 'taps': taps, 'aux': aux}


# ----------------------------------------------------------------------------
# Generation-aware sizing
# ----------------------------------------------------------------------------
def _vmem_plan():
    """(scoped VMEM limit to request, activation budget for Bb sizing)."""
    try:
        phys = pltpu.get_tpu_info().vmem_capacity_bytes
    except Exception:                                   # noqa: BLE001
        phys = 64 << 20                                 # assume smallest (v7x-like)
    limit = int(min(phys // 3, 24 << 20))               # headroom under scoped/phys caps
    return limit, max(4 << 20, limit // 2)


def _batch_block(B, H, WC, act_budget):
    """Batch-block size: within the VMEM activation budget, M = Bb*H near 256,
    and always >=2 (preferably >=4) grid steps for pipelining / v7x megacore."""
    per_elem = H * WC * 4 * 28                          # ~peak live f32 bytes / element
    bb = max(1, act_budget // per_elem)
    bb = min(bb, max(1, -(-256 // H)))                  # M ~ 256 is plenty; MXU has slack
    if B >= 4 and (B // 4) * H >= 128:
        bb = min(bb, B // 4)
    elif B >= 2:
        bb = min(bb, B // 2)
    return max(1, min(bb, B))


# ----------------------------------------------------------------------------
# Apply (lane-dense layout) + NCHW convenience wrapper
# ----------------------------------------------------------------------------
def yqblock_apply_lane(x_lane, packed):
    """Apply YQBlock to a (B, H, W*C) lane-dense f32 tensor; returns same layout.
    Keep activations in this layout across the LatticeNet stack so NCHW<->NHWC
    relayouts are paid once per network, not once per block."""
    B, H, WC = x_lane.shape
    if WC % 128 != 0:
        raise ValueError("lane-dense YQBlock kernel requires W*C to be a "
                         f"multiple of 128 (got {WC}); use a tiled-W variant.")
    pw, lin, taps, aux = packed['pw'], packed['lin'], packed['taps'], packed['aux']
    assert taps.shape == (4, 3, H, 3 * WC)

    vmem_limit, act_budget = _vmem_plan()
    bb = _batch_block(B, H, WC, act_budget)
    n_steps = pl.cdiv(B, bb)
    Bp = n_steps * bb                                    # pad awkward batch sizes
    xp = x_lane if Bp == B else jnp.pad(x_lane, ((0, Bp - B), (0, 0), (0, 0)))

    kernel = _make_kernel(bb, H, WC, _roll_down_sign())
    consts = (pw, lin, taps, aux)
    data_spec = pl.BlockSpec((bb, H, WC), lambda b: (b, 0, 0))
    cparams = pltpu.CompilerParams(dimension_semantics=("parallel",),
                                   vmem_limit_bytes=vmem_limit)

    def const_specs(single_buffered):
        specs = []
        for a in consts:
            idx = (lambda b, _nd=a.ndim: (0,) * _nd)
            if single_buffered:
                # Grid-invariant operands: single resident copy, no double buffer.
                specs.append(pl.BlockSpec(a.shape, idx,
                                          pipeline_mode=pl.Buffered(1)))
            else:
                specs.append(pl.BlockSpec(a.shape, idx))
        return specs

    last_err = None
    for single_buffered in (True, False):     # fall back if Buffered(1) unsupported
        try:
            out = pl.pallas_call(
                kernel,
                out_shape=jax.ShapeDtypeStruct((Bp, H, WC), jnp.float32),
                grid=(n_steps,),
                in_specs=[data_spec] + const_specs(single_buffered),
                out_specs=data_spec,
                compiler_params=cparams,
            )(xp, *consts)
            out = jax.block_until_ready(out)
            return out[:B] if Bp != B else out
        except Exception as err:                          # noqa: BLE001
            last_err = err
    raise last_err


def yqblock_forward(x_nchw, params):
    """(B, C, H, W) NCHW wrapper used for validation.  The two relayouts here
    are HBM-bound XLA ops; in a real model call yqblock_apply_lane directly."""
    B, C, H, W = x_nchw.shape
    packed = pack_yqblock_params(params, H, W, C)
    x_lane = jnp.transpose(x_nchw, (0, 2, 3, 1)).astype(jnp.float32)
    x_lane = x_lane.reshape(B, H, W * C)
    out = yqblock_apply_lane(x_lane, packed)
    return jnp.transpose(out.reshape(B, H, W, C), (0, 3, 1, 2))


# ----------------------------------------------------------------------------
# Synthetic parameters + independent pure-JAX reference (for validation)
# ----------------------------------------------------------------------------
def init_params(key, C):
    """Deterministic synthetic parameters in kernel-friendly orientation:
         pw_w (C,C)[ci,co]; *_dw_w (9,C) row 3*i+j; *_dw_b (C,);
         *_lin_w (rc,C)[ci,co]; *_lin_b (C,)."""
    rc = C // 2
    ks = jax.random.split(key, 16)

    def r(k, shape, scale=0.1):
        return scale * jax.random.normal(k, shape, jnp.float32)

    return {
        'pw_w': r(ks[0], (C, C)),
        'head_dw_w': r(ks[1], (9, C)), 'head_dw_b': r(ks[2], (C,)),
        'up_lin_w': r(ks[3], (rc, C)), 'up_lin_b': r(ks[4], (C,)),
        'up_dw_w': r(ks[5], (9, C)), 'up_dw_b': r(ks[6], (C,)),
        'lo_lin_w': r(ks[7], (rc, C)), 'lo_lin_b': r(ks[8], (C,)),
        'lo_dw_w': r(ks[9], (9, C)), 'lo_dw_b': r(ks[10], (C,)),
        'll_lin_w': r(ks[11], (rc, C)), 'll_lin_b': r(ks[12], (C,)),
        'll_dw_w': r(ks[13], (9, C)), 'll_dw_b': r(ks[14], (C,)),
    }


def ref_forward(x_nchw, params):
    """Straightforward NHWC reference with the same bf16 matmul operands."""
    x = jnp.transpose(x_nchw, (0, 2, 3, 1)).astype(jnp.float32)
    B, H, W, C = x.shape
    rc = C // 2
    bf = jnp.bfloat16

    def dw(y, w9, b):
        yp = jnp.pad(y, ((0, 0), (1, 1), (1, 1), (0, 0)))
        out = jnp.zeros_like(y)
        for i in range(3):
            for j in range(3):
                out = out + yp[:, i:i + H, j:j + W, :] * w9[3 * i + j]
        return out + b

    def lin(y, w, b):
        return jnp.einsum('bhwk,kc->bhwc', y.astype(bf), w.astype(bf),
                          preferred_element_type=jnp.float32) + b

    pw = jnp.einsum('bhwk,kc->bhwc', x.astype(bf), params['pw_w'].astype(bf),
                    preferred_element_type=jnp.float32)
    head = dw(pw, params['head_dw_w'], params['head_dw_b'])
    y = head + x
    ho = jnp.where(y > 0, y, 0.05 * y)
    upper, lower = ho[..., :rc], ho[..., rc:]

    up = dw(lin(upper, params['up_lin_w'], params['up_lin_b']),
            params['up_dw_w'], params['up_dw_b'])
    attn = jax.nn.sigmoid(up)
    lo0 = dw(lin(lower, params['lo_lin_w'], params['lo_lin_b']),
             params['lo_dw_w'], params['lo_dw_b'])
    lo1 = dw(lin(lower, params['ll_lin_w'], params['ll_lin_b']),
             params['ll_dw_w'], params['ll_dw_b'])
    return jnp.transpose((lo0 + lo1) * attn, (0, 3, 1, 2))


if __name__ == "__main__":
    B, C, H, W = 2, 8, 16, 16        # in_ch must be even; W*C = 128 lanes
    key = jax.random.PRNGKey(0)
    k_x, k_p = jax.random.split(key)

    x = jax.random.normal(k_x, (B, C, H, W), jnp.float32)
    params = init_params(k_p, C)

    out = jax.block_until_ready(yqblock_forward(x, params))
    ref = jax.block_until_ready(ref_forward(x, params))
    np.testing.assert_allclose(np.asarray(out), np.asarray(ref),
                               rtol=1e-3, atol=1e-4)

    print("KERNEL_OK")
</pallas_src>

<mosaic_0001>
module attributes {stable_mosaic.version = 11 : i64} {
  func.func @probe(%arg0: memref<8x128xf32, #tpu.memory_space<vmem>>, %arg1: memref<8x128xf32, #tpu.memory_space<vmem>>) attributes {dimension_semantics = [], scalar_prefetch = 0 : i64, scratch_operands = 0 : i64, tpu.core_type = #tpu.core_type<tc>} {
    %c0 = arith.constant 0 : index
    %c0_0 = arith.constant 0 : index
    %0 = vector.load %arg0[%c0, %c0_0] : memref<8x128xf32, #tpu.memory_space<vmem>>, vector<8x128xf32>
    %c1_i32 = arith.constant 1 : i32
    %1 = tpu.dynamic_rotate %0 by %c1_i32 dim 0 : vector<8x128xf32>, i32 -> vector<8x128xf32>
    %c0_1 = arith.constant 0 : index
    %c0_2 = arith.constant 0 : index
    %2 = vector.load %arg1[%c0_1, %c0_2] : memref<8x128xf32, #tpu.memory_space<vmem>>, vector<8x128xf32>
    tpu.vector_store %arg1[%c0_1, %c0_2], %1 {strides = array<i32>} : memref<8x128xf32, #tpu.memory_space<vmem>>, vector<8x128xf32>,
    return
  }
}

</mosaic_0001>

<llo_original>
// kernel: tpu_custom_call.1
$region0: #{tpu_custom_call.1}
  #allocation0 [shape = 'u32[]', space=smem, size = 0x4, offset = 0x4, fixed_abs, tag = 'smem constant byte address 0x4 - core index']
  #allocation1 [shape = 'u32[144,128]{1,0:T(1,128)}', space=vmem, size = 0x12000, scoped, tag = 'internal scratch']
  %s0 = inlined_call_operand.hbm [shape: f32[8,128], index: 0, kind: input, shape index: {}]
  %s1 = inlined_call_operand.hbm [shape: f32[8,128], index: 1, kind: output, shape index: {}]
  %s2 = sld [smem:[#allocation0]]
  $region18: #{tpu_custom_call.1} parent=0
    _
  %s4 = ssub.s32 1, %s2
  %s5 = scalar_select 0, %s4, %s2
  $region1: #{tpu_custom_call.1} parent=0
    #allocation2 [shape = 'u8[4096]{0}', space=vmem, size = 0x1000, scoped, tag = 'input window, operand 0, single buffered']
    #allocation3 [shape = 's32[1]{0}', space=sflag, size = 0x4, scoped, tag = 'scoped memory for tpu_custom_call.1']
    #allocation4 [shape = 's32[1]{0}', space=sflag, size = 0x4, scoped, tag = 'scoped memory for tpu_custom_call.1']
    #allocation5 [shape = 'u8[4096]{0}', space=vmem, size = 0x1000, scoped, tag = 'output window, operand 0, single buffered']
    %6 = vsyncpa [#allocation3], 0
    %7 = vsyncpa [#allocation4], 0
    // Predicated region
    $region2: #{tpu_custom_call.1} parent=1 // pred_check
      _
    $region3: #{tpu_custom_call.1} parent=1 // pred_check_branch
      %9 = sbr.rel (0) target = $region5
    $region4: #{tpu_custom_call.1} parent=1 // pred_region
      %s11 = ssub.s32 128, 128
      %12 = vsyncadd [#allocation3], %s11
      %s14 = sshll.u32 [#allocation2], 4
      %s15 = int_to_ptr.vmem [resolvable:$true] %s14
      %17 = dma.hbm_to_vmem [thread:$0]  %s0, 128, %s15, [#allocation3]
    $region5: #{tpu_custom_call.1} parent=1 // pred_fallthru
      _
    // Predicated region
    $region6: #{tpu_custom_call.1} parent=1 // pred_check
      _
    $region7: #{tpu_custom_call.1} parent=1 // pred_check_branch
      %19 = sbr.rel (0) target = $region9
    $region8: #{tpu_custom_call.1} parent=1 // pred_region
      %20 = dma.done [#allocation3], 128
    $region9: #{tpu_custom_call.1} parent=1 // pred_fallthru
      _
    %v21 = vld [vmem:[#allocation2] sm:$0xff]
    %v22 = vrot.slane %v21, 7
    %23 = vst [vmem:[#allocation5] sm:$0xff] %v22
    // Predicated region
    $region10: #{tpu_custom_call.1} parent=1 // pred_check
      _
    $region11: #{tpu_custom_call.1} parent=1 // pred_check_branch
      %25 = sbr.rel (0) target = $region13
    $region12: #{tpu_custom_call.1} parent=1 // pred_region
      %s27 = ssub.s32 128, 128
      %28 = vsyncadd [#allocation4], %s27
      %s30 = sshll.u32 [#allocation5], 4
      %s31 = int_to_ptr.vmem [resolvable:$true] %s30
      %33 = dma.vmem_to_hbm [thread:$0]  %s31, 128, %s1, [#allocation4]
    $region13: #{tpu_custom_call.1} parent=1 // pred_fallthru
      _
    // Predicated region
    $region14: #{tpu_custom_call.1} parent=1 // pred_check
      _
    $region15: #{tpu_custom_call.1} parent=1 // pred_check_branch
      %35 = sbr.rel (0) target = $region17
    $region16: #{tpu_custom_call.1} parent=1 // pred_region
      %36 = dma.done [#allocation4], 128
    $region17: #{tpu_custom_call.1} parent=1 // pred_fallthru
      _
    %37 = vsyncpa [#allocation3], 1
    %38 = vsyncpa [#allocation4], 1

</llo_original>
